<compile_context>
chip_gen: v6e
topology: v6e:2x2x1
jax: 0.10.0
libtpu: 0.0.40
codegen_flags: <defaults>
</compile_context>

<pallas_src>
import jax
import jax.numpy as jnp
from jax.experimental import pallas as pl
from jax.experimental.pallas import tpu as pltpu


# ----------------------------------------------------------------------------- kernels

def _layer1_kernel(w1t_ref, w2t_ref, xs1_ref, xs2_ref,
                   sin1_ref, sin2_ref, sout1_ref, sout2_ref,
                   wac1_ref, wca1_ref, bac1_ref, bca1_ref,
                   w2bd_ref, z_ref):
    """One dst-node tile of layer 1 + the layer-2 FC pushed through by
    associativity (z epilogue).  Inputs xs1/xs2 are pre-scaled by rsqrt(d_out)."""
    f32 = jnp.float32
    cdt = w1t_ref.dtype                     # MXU compute dtype (f32 or bf16)

    # aggregation against the raw, pre-transposed adjacency tiles [dst, src]
    agg1 = jnp.dot(w1t_ref[...], xs1_ref[...], preferred_element_type=f32)   # (T, F)
    agg2 = jnp.dot(w2t_ref[...], xs2_ref[...], preferred_element_type=f32)   # (T, F)

    # dest-degree scaling commutes with the FC (per-row scalar) -> apply after
    hac = sin1_ref[...] * jnp.dot(agg1.astype(cdt), wac1_ref[...],
                                  preferred_element_type=f32) + bac1_ref[...]  # (T, H1)
    hca = sin2_ref[...] * jnp.dot(agg2.astype(cdt), wca1_ref[...],
                                  preferred_element_type=f32) + bca1_ref[...]  # (T, H1)

    # layer-2 FC pushed through the (linear) layer-2 aggregation:
    #   z = [ (h*s_out1) @ Wac2 | (h*s_out2) @ Wca2 ]  via one block-diag matmul
    h = jnp.concatenate([hac, hca], axis=1)                                    # (T, 2*H1)
    hs = jnp.concatenate([h * sout1_ref[...], h * sout2_ref[...]], axis=1)     # (T, 4*H1)
    z = jnp.dot(hs.astype(cdt), w2bd_ref[...], preferred_element_type=f32)     # (T, 2*H2)

    z_ref[...] = z.astype(z_ref.dtype)       # single lane-dense store


def _layer2_kernel(w1t_ref, w2t_ref, z_ref, sin1_ref, sin2_ref, bcat2_ref, o_ref):
    """One dst-node tile of layer 2: pure adjacency x z aggregation + scaling."""
    f32 = jnp.float32

    r1 = jnp.dot(w1t_ref[...], z_ref[...], preferred_element_type=f32)   # (T, 2*H2)
    r2 = jnp.dot(w2t_ref[...], z_ref[...], preferred_element_type=f32)   # (T, 2*H2)

    # first H2 lanes come from graph 1 / z_ac, last H2 lanes from graph 2 / z_ca
    half = r1.shape[1] // 2
    col = jax.lax.broadcasted_iota(jnp.int32, r1.shape, 1)
    out = jnp.where(col < half, sin1_ref[...] * r1, sin2_ref[...] * r2) + bcat2_ref[...]

    o_ref[...] = out.astype(o_ref.dtype)      # single lane-dense (T, 2*H2) store


# ----------------------------------------------------------------------------- sizing helpers

def _default_vmem_limit_bytes():
    """~100 MiB scoped limit on 128-MiB-VMEM chips (v5e/v6e), ~51 MiB on v7x."""
    try:
        cap = int(pltpu.get_tpu_info().vmem_capacity_bytes)
    except Exception:
        cap = 64 * 1024 * 1024                    # conservative fallback (fits v7x)
    return max(32 * 1024 * 1024, min(int(0.80 * cap), 112 * 1024 * 1024))


def _pick_tile_n(N, F, H1, H2, cdt, vmem_limit_bytes):
    """Largest 128-aligned dst tile whose double-buffered adjacency DMAs plus
    resident operands fit comfortably inside the scoped-VMEM budget."""
    if N % 128 != 0 or N <= 512:
        return N                                   # small / irregular graphs: single tile
    isz = jnp.dtype(cdt).itemsize
    lane = lambda d: max(d, 128)                   # VMEM lane padding
    resident = (2 * N * lane(F) + N * lane(2 * H2)
                + 2 * F * lane(H1) + 4 * H1 * lane(2 * H2)) * isz
    # per dst row: 2 adjacencies x 2 pipeline buffers + scale-vector & output blocks
    per_row = 4 * N * isz + 8 * 128 * 4 + 4 * lane(2 * H2) * 4
    budget = int(0.70 * vmem_limit_bytes) - resident
    t = min(1024, max(128, (budget // per_row) // 128 * 128))
    while t > 128 and N % t:
        t -= 128
    return int(t) if N % t == 0 else N


# ----------------------------------------------------------------------------- wrappers

def preprocess_graphs(w1, w2, compute_dtype=jnp.bfloat16):
    """One-time (cacheable for static graphs) transpose + degree pass per adjacency.
    w1/w2: dense weighted adjacency (N, N) laid out [src, dst]."""
    f32 = jnp.float32
    eps = 1e-12

    def prep(w):
        wf = w.astype(f32)
        s_out = jax.lax.rsqrt(jnp.maximum(jnp.sum(wf, axis=1, keepdims=True), eps))  # (N,1)
        s_in = jax.lax.rsqrt(jnp.maximum(jnp.sum(wf, axis=0), eps))[:, None]          # (N,1)
        wt = wf.T.astype(compute_dtype)                                                # [dst, src]
        return wt, s_out, s_in

    w1t, s_out1, s_in1 = prep(w1)
    w2t, s_out2, s_in2 = prep(w2)
    # TODO(synk): optional float8_e4m3 adjacency cast for v7x (halves the dominant
    # HBM stream again); requires tile_n % 32 == 0 and is not applicable to v5e/v6e.
    return dict(w1t=w1t, w2t=w2t,
                s_out1=s_out1, s_out2=s_out2, s_in1=s_in1, s_in2=s_in2)


def multiplex_gcn_apply(graphs, x, params, *, tile_n=None, vmem_limit_bytes=None):
    f32 = jnp.float32
    w1t, w2t = graphs["w1t"], graphs["w2t"]
    s_out1, s_out2 = graphs["s_out1"], graphs["s_out2"]
    s_in1, s_in2 = graphs["s_in1"], graphs["s_in2"]
    cdt = w1t.dtype

    N, F = x.shape
    assert w1t.shape == (N, N) and w2t.shape == (N, N)
    (wac1, bac1), (wca1, bca1), (wac2, bac2), (wca2, bca2) = params
    H1, H2 = wac1.shape[1], wac2.shape[1]
    assert wac2.shape[0] == 2 * H1 and wca2.shape[0] == 2 * H1

    if vmem_limit_bytes is None:
        vmem_limit_bytes = _default_vmem_limit_bytes()
    if tile_n is None:
        tile_n = _pick_tile_n(N, F, H1, H2, cdt, vmem_limit_bytes)

    min_sub = {1: 32, 2: 16, 4: 8}.get(jnp.dtype(cdt).itemsize, 8)
    assert N % tile_n == 0, "N must be divisible by tile_n"
    assert tile_n == N or tile_n % min_sub == 0, (
        f"tile_n must be a multiple of {min_sub} for dtype {cdt} (or == N); "
        "prefer multiples of 128 for production shapes")
    n_tiles = N // tile_n

    # --- grid-invariant pre-scaling / weight prep, hoisted out of the kernels ---
    xf = x.astype(f32)
    xs1 = (xf * s_out1).astype(cdt)            # (N, F) source features, graph-1 scaled
    xs2 = (xf * s_out2).astype(cdt)

    wac1c, wca1c = wac1.astype(cdt), wca1.astype(cdt)
    bac1f = bac1.reshape(1, H1).astype(f32)
    bca1f = bca1.reshape(1, H1).astype(f32)

    # block-diagonal layer-2 FC: [h*s1 | h*s2] @ W2bd == [(h*s1)@Wac2 | (h*s2)@Wca2]
    w2bd = jnp.zeros((4 * H1, 2 * H2), f32)
    w2bd = w2bd.at[:2 * H1, :H2].set(wac2.astype(f32))
    w2bd = w2bd.at[2 * H1:, H2:].set(wca2.astype(f32))
    w2bd = w2bd.astype(cdt)
    bcat2 = jnp.concatenate([bac2.reshape(1, H2), bca2.reshape(1, H2)], axis=1).astype(f32)

    cp = pltpu.CompilerParams(
        dimension_semantics=("parallel",),      # dst tiles independent -> megacore / 2-TC
        vmem_limit_bytes=int(vmem_limit_bytes),
    )

    adj_spec = pl.BlockSpec((tile_n, N), lambda i: (i, 0))
    vec_tile = pl.BlockSpec((tile_n, 1), lambda i: (i, 0))

    def resident(shape):
        # Constant-index blocks (fetched once / kept resident by the pipeline).
        # TODO(synk): pin to a single pipeline buffer (pl.Buffered(1)) to reclaim
        # the redundant second buffer once that option is stable in this jax version.
        return pl.BlockSpec(shape, lambda i: (0, 0))

    # ---- layer 1 (+ z epilogue): one lane-dense (N, 2*H2) compute-dtype intermediate ----
    z = pl.pallas_call(
        _layer1_kernel,
        grid=(n_tiles,),
        in_specs=[
            adj_spec,                           # w1t tile   (tile_n, N)
            adj_spec,                           # w2t tile
            resident((N, F)),                   # xs1 (all sources, pre-scaled, cdt)
            resident((N, F)),                   # xs2
            vec_tile,                           # s_in1 (this tile's dst rows)
            vec_tile,                           # s_in2
            vec_tile,                           # s_out1 (this tile's rows, for z epilogue)
            vec_tile,                           # s_out2
            resident((F, H1)),                  # Wac1
            resident((F, H1)),                  # Wca1
            resident((1, H1)),                  # bac1
            resident((1, H1)),                  # bca1
            resident((4 * H1, 2 * H2)),         # block-diag layer-2 FC
        ],
        out_specs=pl.BlockSpec((tile_n, 2 * H2), lambda i: (i, 0)),
        out_shape=jax.ShapeDtypeStruct((N, 2 * H2), cdt),
        compiler_params=cp,
    )(w1t, w2t, xs1, xs2, s_in1, s_in2, s_out1, s_out2,
      wac1c, wca1c, bac1f, bca1f, w2bd)

    # ---- layer 2: sin * (W_t_tile @ z) + bias, one lane-dense output store ----
    out = pl.pallas_call(
        _layer2_kernel,
        grid=(n_tiles,),
        in_specs=[
            adj_spec,                           # w1t tile
            adj_spec,                           # w2t tile
            resident((N, 2 * H2)),              # z (all sources, resident)
            vec_tile,                           # s_in1
            vec_tile,                           # s_in2
            resident((1, 2 * H2)),              # [bac2 | bca2]
        ],
        out_specs=pl.BlockSpec((tile_n, 2 * H2), lambda i: (i, 0)),
        out_shape=jax.ShapeDtypeStruct((N, 2 * H2), f32),
        compiler_params=cp,
    )(w1t, w2t, z, s_in1, s_in2, bcat2)
    return out


def multiplex_gcn(w1, w2, x, params, *, tile_n=None, compute_dtype=jnp.bfloat16,
                  vmem_limit_bytes=None):
    """Convenience wrapper; for static graphs cache preprocess_graphs() and call
    multiplex_gcn_apply() directly to avoid re-doing the N^2 transpose/degree passes."""
    graphs = preprocess_graphs(w1, w2, compute_dtype)
    return multiplex_gcn_apply(graphs, x, params, tile_n=tile_n,
                               vmem_limit_bytes=vmem_limit_bytes)


# ----------------------------------------------------------------------------- reference

def reference(w1, w2, x, params):
    def norm_prop(w):
        d_out = jnp.sum(w, axis=1, keepdims=True)
        d_in = jnp.sum(w, axis=0, keepdims=True)
        return (w / jnp.sqrt(jnp.maximum(d_out, 1e-12))
                  / jnp.sqrt(jnp.maximum(d_in, 1e-12))).T

    p1, p2 = norm_prop(w1), norm_prop(w2)
    (wac1, bac1), (wca1, bca1), (wac2, bac2), (wca2, bca2) = params
    h = jnp.concatenate([p1 @ x @ wac1 + bac1, p2 @ x @ wca1 + bca1], axis=1)
    return jnp.concatenate([p1 @ h @ wac2 + bac2, p2 @ h @ wca2 + bca2], axis=1)


def _xavier_uniform(key, fan_in, fan_out):
    a = (6.0 / (fan_in + fan_out)) ** 0.5
    return jax.random.uniform(key, (fan_in, fan_out), jnp.float32, -a, a)


if __name__ == "__main__":
    key = jax.random.PRNGKey(0)
    N = 16               # number of nodes
    F = 8                # node_emb_dim
    H1, H2 = 16, 8       # gl_hidden_size = [16, 8]

    ks = jax.random.split(key, 11)
    x = jax.random.normal(ks[0], (N, F), jnp.float32)
    # dense positive edge weights (every node has positive weighted degree)
    w1 = jax.random.uniform(ks[1], (N, N), jnp.float32, 0.1, 1.0)
    w2 = jax.random.uniform(ks[2], (N, N), jnp.float32, 0.1, 1.0)

    params = (
        (_xavier_uniform(ks[3], F, H1),
         0.01 * jax.random.normal(ks[4], (1, H1), jnp.float32)),       # convAC1
        (_xavier_uniform(ks[5], F, H1),
         0.01 * jax.random.normal(ks[6], (1, H1), jnp.float32)),       # convCA1
        (_xavier_uniform(ks[7], 2 * H1, H2),
         0.01 * jax.random.normal(ks[8], (1, H2), jnp.float32)),       # convAC2
        (_xavier_uniform(ks[9], 2 * H1, H2),
         0.01 * jax.random.normal(ks[10], (1, H2), jnp.float32)),      # convCA2
    )

    ref = reference(w1, w2, x, params)

    # f32 MXU path, tiled over dst nodes (tile=8 -> grid of 2 steps): tight check.
    out_f32 = jax.block_until_ready(
        multiplex_gcn(w1, w2, x, params, tile_n=8, compute_dtype=jnp.float32))
    assert out_f32.shape == (N, 2 * H2), out_f32.shape
    assert jnp.allclose(out_f32, ref, atol=1e-4, rtol=1e-4), "f32 mismatch vs reference"

    # default bf16 MXU path (f32 accumulation, bf16 intermediate z): loose check.
    out_bf16 = jax.block_until_ready(multiplex_gcn(w1, w2, x, params))
    assert out_bf16.shape == (N, 2 * H2), out_bf16.shape
    assert bool(jnp.isfinite(out_bf16).all())
    rel_err = float(jnp.linalg.norm(out_bf16 - ref) / jnp.linalg.norm(ref))
    assert rel_err < 0.05, f"bf16 relative error too large: {rel_err}"

    print("KERNEL_OK")
</pallas_src>

<mosaic_0001>
module attributes {stable_mosaic.version = 11 : i64} {
  func.func @_layer1_kernel(%arg0: i32, %arg1: memref<8x16xf32, #tpu.memory_space<vmem>>, %arg2: memref<8x16xf32, #tpu.memory_space<vmem>>, %arg3: memref<16x8xf32, #tpu.memory_space<vmem>>, %arg4: memref<16x8xf32, #tpu.memory_space<vmem>>, %arg5: memref<8x1xf32, #tpu.memory_space<vmem>>, %arg6: memref<8x1xf32, #tpu.memory_space<vmem>>, %arg7: memref<8x1xf32, #tpu.memory_space<vmem>>, %arg8: memref<8x1xf32, #tpu.memory_space<vmem>>, %arg9: memref<8x16xf32, #tpu.memory_space<vmem>>, %arg10: memref<8x16xf32, #tpu.memory_space<vmem>>, %arg11: memref<1x16xf32, #tpu.memory_space<vmem>>, %arg12: memref<1x16xf32, #tpu.memory_space<vmem>>, %arg13: memref<64x16xf32, #tpu.memory_space<vmem>>, %arg14: memref<8x16xf32, #tpu.memory_space<vmem>>) attributes {dimension_semantics = [#tpu.dimension_semantics<parallel>], iteration_bounds = array<i64: 2>, scalar_prefetch = 0 : i64, scratch_operands = 0 : i64, tpu.core_type = #tpu.core_type<tc>, window_params = [{transform_indices = @transform_0, window_bounds = array<i64: 8, 16>}, {transform_indices = @transform_1, window_bounds = array<i64: 8, 16>}, {pipeline_mode = #tpu.pipeline_mode<synchronous>, transform_indices = @transform_2, window_bounds = array<i64: 16, 8>}, {pipeline_mode = #tpu.pipeline_mode<synchronous>, transform_indices = @transform_3, window_bounds = array<i64: 16, 8>}, {transform_indices = @transform_4, window_bounds = array<i64: 8, 1>}, {transform_indices = @transform_5, window_bounds = array<i64: 8, 1>}, {transform_indices = @transform_6, window_bounds = array<i64: 8, 1>}, {transform_indices = @transform_7, window_bounds = array<i64: 8, 1>}, {pipeline_mode = #tpu.pipeline_mode<synchronous>, transform_indices = @transform_8, window_bounds = array<i64: 8, 16>}, {pipeline_mode = #tpu.pipeline_mode<synchronous>, transform_indices = @transform_9, window_bounds = array<i64: 8, 16>}, {pipeline_mode = #tpu.pipeline_mode<synchronous>, transform_indices = @transform_10, window_bounds = array<i64: 1, 16>}, {pipeline_mode = #tpu.pipeline_mode<synchronous>, transform_indices = @transform_11, window_bounds = array<i64: 1, 16>}, {pipeline_mode = #tpu.pipeline_mode<synchronous>, transform_indices = @transform_12, window_bounds = array<i64: 64, 16>}, {transform_indices = @transform_13, window_bounds = array<i64: 8, 16>}]} {
    %c0 = arith.constant 0 : index
    %c0_0 = arith.constant 0 : index
    %0 = vector.load %arg1[%c0, %c0_0] : memref<8x16xf32, #tpu.memory_space<vmem>>, vector<8x16xf32>
    %c0_1 = arith.constant 0 : index
    %c0_2 = arith.constant 0 : index
    %1 = vector.load %arg3[%c0_1, %c0_2] : memref<16x8xf32, #tpu.memory_space<vmem>>, vector<16x8xf32>
    %cst = arith.constant dense<0.000000e+00> : vector<8x8xf32>
    %2 = tpu.matmul %0, %1, %cst {dimension_numbers = #tpu.dot_dimension_numbers<[1], [0], [0], [1], [0, 0, 1, 1], [], []>} : vector<8x16xf32>, vector<16x8xf32>, vector<8x8xf32> -> vector<8x8xf32>
    %c0_3 = arith.constant 0 : index
    %c0_4 = arith.constant 0 : index
    %3 = vector.load %arg2[%c0_3, %c0_4] : memref<8x16xf32, #tpu.memory_space<vmem>>, vector<8x16xf32>
    %c0_5 = arith.constant 0 : index
    %c0_6 = arith.constant 0 : index
    %4 = vector.load %arg4[%c0_5, %c0_6] : memref<16x8xf32, #tpu.memory_space<vmem>>, vector<16x8xf32>
    %cst_7 = arith.constant dense<0.000000e+00> : vector<8x8xf32>
    %5 = tpu.matmul %3, %4, %cst_7 {dimension_numbers = #tpu.dot_dimension_numbers<[1], [0], [0], [1], [0, 0, 1, 1], [], []>} : vector<8x16xf32>, vector<16x8xf32>, vector<8x8xf32> -> vector<8x8xf32>
    %c0_8 = arith.constant 0 : index
    %c0_9 = arith.constant 0 : index
    %6 = vector.load %arg5[%c0_8, %c0_9] : memref<8x1xf32, #tpu.memory_space<vmem>>, vector<8x1xf32>
    %c0_10 = arith.constant 0 : index
    %c0_11 = arith.constant 0 : index
    %7 = vector.load %arg9[%c0_10, %c0_11] : memref<8x16xf32, #tpu.memory_space<vmem>>, vector<8x16xf32>
    %cst_12 = arith.constant dense<0.000000e+00> : vector<8x16xf32>
    %8 = tpu.matmul %2, %7, %cst_12 {dimension_numbers = #tpu.dot_dimension_numbers<[1], [0], [0], [1], [0, 0, 1, 1], [], []>} : vector<8x8xf32>, vector<8x16xf32>, vector<8x16xf32> -> vector<8x16xf32>
    %9 = vector.broadcast %6 : vector<8x1xf32> to vector<8x16xf32>
    %10 = arith.mulf %9, %8 : vector<8x16xf32>
    %c0_13 = arith.constant 0 : index
    %c0_14 = arith.constant 0 : index
    %11 = vector.load %arg11[%c0_13, %c0_14] : memref<1x16xf32, #tpu.memory_space<vmem>>, vector<1x16xf32>
    %12 = vector.broadcast %11 : vector<1x16xf32> to vector<8x16xf32>
    %13 = arith.addf %10, %12 : vector<8x16xf32>
    %c0_15 = arith.constant 0 : index
    %c0_16 = arith.constant 0 : index
    %14 = vector.load %arg6[%c0_15, %c0_16] : memref<8x1xf32, #tpu.memory_space<vmem>>, vector<8x1xf32>
    %c0_17 = arith.constant 0 : index
    %c0_18 = arith.constant 0 : index
    %15 = vector.load %arg10[%c0_17, %c0_18] : memref<8x16xf32, #tpu.memory_space<vmem>>, vector<8x16xf32>
    %cst_19 = arith.constant dense<0.000000e+00> : vector<8x16xf32>
    %16 = tpu.matmul %5, %15, %cst_19 {dimension_numbers = #tpu.dot_dimension_numbers<[1], [0], [0], [1], [0, 0, 1, 1], [], []>} : vector<8x8xf32>, vector<8x16xf32>, vector<8x16xf32> -> vector<8x16xf32>
    %17 = vector.broadcast %14 : vector<8x1xf32> to vector<8x16xf32>
    %18 = arith.mulf %17, %16 : vector<8x16xf32>
    %c0_20 = arith.constant 0 : index
    %c0_21 = arith.constant 0 : index
    %19 = vector.load %arg12[%c0_20, %c0_21] : memref<1x16xf32, #tpu.memory_space<vmem>>, vector<1x16xf32>
    %20 = vector.broadcast %19 : vector<1x16xf32> to vector<8x16xf32>
    %21 = arith.addf %18, %20 : vector<8x16xf32>
    %22 = tpu.concatenate %13, %21 in 1 : vector<8x16xf32>, vector<8x16xf32> -> vector<8x32xf32>
    %c0_22 = arith.constant 0 : index
    %c0_23 = arith.constant 0 : index
    %23 = vector.load %arg7[%c0_22, %c0_23] : memref<8x1xf32, #tpu.memory_space<vmem>>, vector<8x1xf32>
    %24 = vector.broadcast %23 : vector<8x1xf32> to vector<8x32xf32>
    %25 = arith.mulf %22, %24 : vector<8x32xf32>
    %c0_24 = arith.constant 0 : index
    %c0_25 = arith.constant 0 : index
    %26 = vector.load %arg8[%c0_24, %c0_25] : memref<8x1xf32, #tpu.memory_space<vmem>>, vector<8x1xf32>
    %27 = vector.broadcast %26 : vector<8x1xf32> to vector<8x32xf32>
    %28 = arith.mulf %22, %27 : vector<8x32xf32>
    %29 = tpu.concatenate %25, %28 in 1 : vector<8x32xf32>, vector<8x32xf32> -> vector<8x64xf32>
    %c0_26 = arith.constant 0 : index
    %c0_27 = arith.constant 0 : index
    %30 = vector.load %arg13[%c0_26, %c0_27] : memref<64x16xf32, #tpu.memory_space<vmem>>, vector<64x16xf32>
    %cst_28 = arith.constant dense<0.000000e+00> : vector<8x16xf32>
    %31 = tpu.matmul %29, %30, %cst_28 {dimension_numbers = #tpu.dot_dimension_numbers<[1], [0], [0], [1], [0, 0, 1, 1], [], []>} : vector<8x64xf32>, vector<64x16xf32>, vector<8x16xf32> -> vector<8x16xf32>
    %c0_29 = arith.constant 0 : index
    %c0_30 = arith.constant 0 : index
    %32 = vector.load %arg14[%c0_29, %c0_30] : memref<8x16xf32, #tpu.memory_space<vmem>>, vector<8x16xf32>
    tpu.vector_store %arg14[%c0_29, %c0_30], %31 {strides = array<i32>} : memref<8x16xf32, #tpu.memory_space<vmem>>, vector<8x16xf32>,
    return
  }
  func.func @transform_0(%arg0: i32) -> (i32, i32) {
    %c0_i32 = arith.constant 0 : i32
    %c0_i32_0 = arith.constant 0 : i32
    return %arg0, %c0_i32 : i32, i32
  }
  func.func @transform_1(%arg0: i32) -> (i32, i32) {
    %c0_i32 = arith.constant 0 : i32
    %c0_i32_0 = arith.constant 0 : i32
    return %arg0, %c0_i32 : i32, i32
  }
  func.func @transform_2(%arg0: i32) -> (i32, i32) {
    %c0_i32 = arith.constant 0 : i32
    %c0_i32_0 = arith.constant 0 : i32
    %c0_i32_1 = arith.constant 0 : i32
    return %c0_i32, %c0_i32_0 : i32, i32
  }
  func.func @transform_3(%arg0: i32) -> (i32, i32) {
    %c0_i32 = arith.constant 0 : i32
    %c0_i32_0 = arith.constant 0 : i32
    %c0_i32_1 = arith.constant 0 : i32
    return %c0_i32, %c0_i32_0 : i32, i32
  }
  func.func @transform_4(%arg0: i32) -> (i32, i32) {
    %c0_i32 = arith.constant 0 : i32
    %c0_i32_0 = arith.constant 0 : i32
    return %arg0, %c0_i32 : i32, i32
  }
  func.func @transform_5(%arg0: i32) -> (i32, i32) {
    %c0_i32 = arith.constant 0 : i32
    %c0_i32_0 = arith.constant 0 : i32
    return %arg0, %c0_i32 : i32, i32
  }
  func.func @transform_6(%arg0: i32) -> (i32, i32) {
    %c0_i32 = arith.constant 0 : i32
    %c0_i32_0 = arith.constant 0 : i32
    return %arg0, %c0_i32 : i32, i32
  }
  func.func @transform_7(%arg0: i32) -> (i32, i32) {
    %c0_i32 = arith.constant 0 : i32
    %c0_i32_0 = arith.constant 0 : i32
    return %arg0, %c0_i32 : i32, i32
  }
  func.func @transform_8(%arg0: i32) -> (i32, i32) {
    %c0_i32 = arith.constant 0 : i32
    %c0_i32_0 = arith.constant 0 : i32
    %c0_i32_1 = arith.constant 0 : i32
    return %c0_i32, %c0_i32_0 : i32, i32
  }
  func.func @transform_9(%arg0: i32) -> (i32, i32) {
    %c0_i32 = arith.constant 0 : i32
    %c0_i32_0 = arith.constant 0 : i32
    %c0_i32_1 = arith.constant 0 : i32
    return %c0_i32, %c0_i32_0 : i32, i32
  }
  func.func @transform_10(%arg0: i32) -> (i32, i32) {
    %c0_i32 = arith.constant 0 : i32
    %c0_i32_0 = arith.constant 0 : i32
    %c0_i32_1 = arith.constant 0 : i32
    return %c0_i32, %c0_i32_0 : i32, i32
  }
  func.func @transform_11(%arg0: i32) -> (i32, i32) {
    %c0_i32 = arith.constant 0 : i32
    %c0_i32_0 = arith.constant 0 : i32
    %c0_i32_1 = arith.constant 0 : i32
    return %c0_i32, %c0_i32_0 : i32, i32
  }
  func.func @transform_12(%arg0: i32) -> (i32, i32) {
    %c0_i32 = arith.constant 0 : i32
    %c0_i32_0 = arith.constant 0 : i32
    %c0_i32_1 = arith.constant 0 : i32
    return %c0_i32, %c0_i32_0 : i32, i32
  }
  func.func @transform_13(%arg0: i32) -> (i32, i32) {
    %c0_i32 = arith.constant 0 : i32
    %c0_i32_0 = arith.constant 0 : i32
    return %arg0, %c0_i32 : i32, i32
  }
}

</mosaic_0001>

<llo_original>
// kernel: tpu_custom_call.1
$region0: #{tpu_custom_call.1}
  #allocation0 [shape = 'u32[]', space=smem, size = 0x4, offset = 0x4, fixed_abs, tag = 'smem constant byte address 0x4 - core index']
  #allocation1 [shape = 'u32[144,128]{1,0:T(1,128)}', space=vmem, size = 0x12000, scoped, tag = 'internal scratch']
  %s0 = inlined_call_operand.vmem [shape: f32[16,16], index: 0, kind: input, shape index: {}]
  %s1 = inlined_call_operand.vmem [shape: f32[16,16], index: 1, kind: input, shape index: {}]
  %s2 = inlined_call_operand.vmem [shape: f32[16,8], index: 2, kind: input, shape index: {}]
  %s3 = inlined_call_operand.vmem [shape: f32[16,8], index: 3, kind: input, shape index: {}]
  %s4 = inlined_call_operand.vmem [shape: f32[16,1], index: 4, kind: input, shape index: {}]
  %s5 = inlined_call_operand.vmem [shape: f32[16,1], index: 5, kind: input, shape index: {}]
  %s6 = inlined_call_operand.vmem [shape: f32[16,1], index: 6, kind: input, shape index: {}]
  %s7 = inlined_call_operand.vmem [shape: f32[16,1], index: 7, kind: input, shape index: {}]
  %s8 = inlined_call_operand.vmem [shape: f32[8,16], index: 8, kind: input, shape index: {}]
  %s9 = inlined_call_operand.vmem [shape: f32[8,16], index: 9, kind: input, shape index: {}]
  %s10 = inlined_call_operand.vmem [shape: f32[1,16], index: 10, kind: input, shape index: {}]
  %s11 = inlined_call_operand.vmem [shape: f32[1,16], index: 11, kind: input, shape index: {}]
  %s12 = inlined_call_operand.vmem [shape: f32[64,16], index: 12, kind: input, shape index: {}]
  %s13 = inlined_call_operand.hbm [shape: f32[16,16], index: 13, kind: output, shape index: {}]
  %s14 = sld [smem:[#allocation0]]
  $region85: #{tpu_custom_call.1} parent=0
    _
  %s16 = ssub.s32 1, %s14
  %s17 = scalar_select 0, %s16, %s14
  $region1: #{tpu_custom_call.1} parent=0
    #allocation2 [shape = 'u8[8192]{0}', space=vmem, size = 0x2000, scoped, tag = 'output window, operand 0']
    #allocation3 [shape = 's32[2]{0}', space=sflag, size = 0x8, scoped, tag = 'scoped memory for tpu_custom_call.1']
    %18 = vsyncpa [#allocation3], 0
    %s19 = scalar_lea.sflag [#allocation3], 1
    %20 = vsyncpa %s19, 0
    loop: start=0, step=1, limit=4
    $region2: #{tpu_custom_call.1} parent=1 // loop_pre_header
      _
    $region3: #{tpu_custom_call.1} parent=1 // loop_header
      %s22 = sphi 0, %s26
      %p23 = scmp.ge.s32.totalorder %s22, 4
      %s32 = sphi 0, %s34
      %s35 = sphi 0, %s32
      %s36 = sphi 0, %s35
      %s52 = sphi 0, %s36
      %s58 = sphi 0, %s60
      %s61 = sphi 0, %s58
      %s62 = sphi 0, %s61
      %s78 = sphi 0, %s62
      %s82 = sphi 0, %s82
      %s84 = sphi 0, %s82
      %s85 = sphi 0, %s84
      %s99 = sphi 0, %s85
      %s103 = sphi 0, %s103
      %s105 = sphi 0, %s103
      %s106 = sphi 0, %s105
      %s120 = sphi 0, %s106
      %s126 = sphi 0, %s128
      %s129 = sphi 0, %s126
      %s130 = sphi 0, %s129
      %s146 = sphi 0, %s130
      %s152 = sphi 0, %s154
      %s155 = sphi 0, %s152
      %s156 = sphi 0, %s155
      %s172 = sphi 0, %s156
      %s178 = sphi 0, %s180
      %s181 = sphi 0, %s178
      %s182 = sphi 0, %s181
      %s198 = sphi 0, %s182
      %s204 = sphi 0, %s206
      %s207 = sphi 0, %s204
      %s208 = sphi 0, %s207
      %s224 = sphi 0, %s208
      %s228 = sphi 0, %s228
      %s230 = sphi 0, %s228
      %s231 = sphi 0, %s230
      %s245 = sphi 0, %s231
      %s249 = sphi 0, %s249
      %s251 = sphi 0, %s249
      %s252 = sphi 0, %s251
      %s266 = sphi 0, %s252
      %s270 = sphi 0, %s270
      %s272 = sphi 0, %s270
      %s273 = sphi 0, %s272
      %s287 = sphi 0, %s273
      %s291 = sphi 0, %s291
      %s293 = sphi 0, %s291
      %s294 = sphi 0, %s293
      %s308 = sphi 0, %s294
      %s312 = sphi 0, %s312
      %s314 = sphi 0, %s312
      %s315 = sphi 0, %s314
      %s329 = sphi 0, %s315
      %s335 = sphi 0, %s337
      %s338 = sphi 0, %s335
      %s339 = sphi 0, %s338
      %s355 = sphi 0, %s339
    $region4: #{tpu_custom_call.1} parent=1 // loop_header_branch
      %25 = sbr.rel (%p23) target = $region8
    $region5: #{tpu_custom_call.1} parent=1 // loop_body
      %s27 = ssub.s32 %s22, 1
      %s28 = ssub.s32 %s22, 2
      %s29 = sadd.s32 %s22, 1
      %s30 = ssub.s32 %s22, %s29
      %p31 = scmp.eq.s32.totalorder %s30, 0
      %s33 = sadd.s32 %s32, 1
      %s34 = scalar_select %p31, %s32, %s33
      %p37 = pneg %p31
      %p38 = scmp.eq.s32.totalorder %s22, 1
      %p39 = por %p37, %p38
      %p40 = scmp.ne.s32.totalorder %s32, %s35
      %p41 = scmp.eq.s32.totalorder %s22, 0
      %p42 = por %p40, %p41
      %p43 = scmp.ne.s32.totalorder %s32, %s35
      %p44 = scmp.eq.s32.totalorder %s27, 1
      %p45 = por %p43, %p44
      %p46 = scmp.ne.s32.totalorder %s35, %s36
      %p47 = scmp.eq.s32.totalorder %s27, 0
      %p48 = por %p46, %p47
      %p49 = scmp.ne.s32.totalorder %s35, %s36
      %p50 = scmp.eq.s32.totalorder %s28, 1
      %p51 = por %p49, %p50
      %p53 = scmp.ne.s32.totalorder %s36, %s52
      %p54 = scmp.eq.s32.totalorder %s28, 0
      %p55 = por %p53, %p54
      %s56 = ssub.s32 %s22, %s29
      %p57 = scmp.eq.s32.totalorder %s56, 0
      %s59 = sadd.s32 %s58, 1
      %s60 = scalar_select %p57, %s58, %s59
      %p63 = pneg %p57
      %p64 = scmp.eq.s32.totalorder %s22, 1
      %p65 = por %p63, %p64
      %p66 = scmp.ne.s32.totalorder %s58, %s61
      %p67 = scmp.eq.s32.totalorder %s22, 0
      %p68 = por %p66, %p67
      %p69 = scmp.ne.s32.totalorder %s58, %s61
      %p70 = scmp.eq.s32.totalorder %s27, 1
      %p71 = por %p69, %p70
      %p72 = scmp.ne.s32.totalorder %s61, %s62
      %p73 = scmp.eq.s32.totalorder %s27, 0
      %p74 = por %p72, %p73
      %p75 = scmp.ne.s32.totalorder %s61, %s62
      %p76 = scmp.eq.s32.totalorder %s28, 1
      %p77 = por %p75, %p76
      %p79 = scmp.ne.s32.totalorder %s62, %s78
      %p80 = scmp.eq.s32.totalorder %s28, 0
      %p81 = por %p79, %p80
      %s83 = sadd.s32 %s82, 1
      %p86 = scmp.eq.s32.totalorder %s22, 1
      %p87 = scmp.ne.s32.totalorder %s82, %s84
      %p88 = scmp.eq.s32.totalorder %s22, 0
      %p89 = por %p87, %p88
      %p90 = scmp.ne.s32.totalorder %s82, %s84
      %p91 = scmp.eq.s32.totalorder %s27, 1
      %p92 = por %p90, %p91
      %p93 = scmp.ne.s32.totalorder %s84, %s85
      %p94 = scmp.eq.s32.totalorder %s27, 0
      %p95 = por %p93, %p94
      %p96 = scmp.ne.s32.totalorder %s84, %s85
      %p97 = scmp.eq.s32.totalorder %s28, 1
      %p98 = por %p96, %p97
      %p100 = scmp.ne.s32.totalorder %s85, %s99
      %p101 = scmp.eq.s32.totalorder %s28, 0
      %p102 = por %p100, %p101
      %s104 = sadd.s32 %s103, 1
      %p107 = scmp.eq.s32.totalorder %s22, 1
      %p108 = scmp.ne.s32.totalorder %s103, %s105
      %p109 = scmp.eq.s32.totalorder %s22, 0
      %p110 = por %p108, %p109
      %p111 = scmp.ne.s32.totalorder %s103, %s105
      %p112 = scmp.eq.s32.totalorder %s27, 1
      %p113 = por %p111, %p112
      %p114 = scmp.ne.s32.totalorder %s105, %s106
      %p115 = scmp.eq.s32.totalorder %s27, 0
      %p116 = por %p114, %p115
      %p117 = scmp.ne.s32.totalorder %s105, %s106
      %p118 = scmp.eq.s32.totalorder %s28, 1
      %p119 = por %p117, %p118
      %p121 = scmp.ne.s32.totalorder %s106, %s120
      %p122 = scmp.eq.s32.totalorder %s28, 0
      %p123 = por %p121, %p122
      %s124 = ssub.s32 %s22, %s29
      %p125 = scmp.eq.s32.totalorder %s124, 0
      %s127 = sadd.s32 %s126, 1
      %s128 = scalar_select %p125, %s126, %s127
      %p131 = pneg %p125
      %p132 = scmp.eq.s32.totalorder %s22, 1
      %p133 = por %p131, %p132
      %p134 = scmp.ne.s32.totalorder %s126, %s129
      %p135 = scmp.eq.s32.totalorder %s22, 0
      %p136 = por %p134, %p135
      %p137 = scmp.ne.s32.totalorder %s126, %s129
      %p138 = scmp.eq.s32.totalorder %s27, 1
      %p139 = por %p137, %p138
      %p140 = scmp.ne.s32.totalorder %s129, %s130
      %p141 = scmp.eq.s32.totalorder %s27, 0
      %p142 = por %p140, %p141
      %p143 = scmp.ne.s32.totalorder %s129, %s130
      %p144 = scmp.eq.s32.totalorder %s28, 1
      %p145 = por %p143, %p144
      %p147 = scmp.ne.s32.totalorder %s130, %s146
      %p148 = scmp.eq.s32.totalorder %s28, 0
      %p149 = por %p147, %p148
      %s150 = ssub.s32 %s22, %s29
      %p151 = scmp.eq.s32.totalorder %s150, 0
      %s153 = sadd.s32 %s152, 1
      %s154 = scalar_select %p151, %s152, %s153
      %p157 = pneg %p151
      %p158 = scmp.eq.s32.totalorder %s22, 1
      %p159 = por %p157, %p158
      %p160 = scmp.ne.s32.totalorder %s152, %s155
      %p161 = scmp.eq.s32.totalorder %s22, 0
      %p162 = por %p160, %p161
      %p163 = scmp.ne.s32.totalorder %s152, %s155
      %p164 = scmp.eq.s32.totalorder %s27, 1
      %p165 = por %p163, %p164
      %p166 = scmp.ne.s32.totalorder %s155, %s156
      %p167 = scmp.eq.s32.totalorder %s27, 0
      %p168 = por %p166, %p167
      %p169 = scmp.ne.s32.totalorder %s155, %s156
      %p170 = scmp.eq.s32.totalorder %s28, 1
      %p171 = por %p169, %p170
      %p173 = scmp.ne.s32.totalorder %s156, %s172
      %p174 = scmp.eq.s32.totalorder %s28, 0
      %p175 = por %p173, %p174
      %s176 = ssub.s32 %s22, %s29
      %p177 = scmp.eq.s32.totalorder %s176, 0
      %s179 = sadd.s32 %s178, 1
      %s180 = scalar_select %p177, %s178, %s179
      %p183 = pneg %p177
      %p184 = scmp.eq.s32.totalorder %s22, 1
      %p185 = por %p183, %p184
      %p186 = scmp.ne.s32.totalorder %s178, %s181
      %p187 = scmp.eq.s32.totalorder %s22, 0
      %p188 = por %p186, %p187
      %p189 = scmp.ne.s32.totalorder %s178, %s181
      %p190 = scmp.eq.s32.totalorder %s27, 1
      %p191 = por %p189, %p190
      %p192 = scmp.ne.s32.totalorder %s181, %s182
      %p193 = scmp.eq.s32.totalorder %s27, 0
      %p194 = por %p192, %p193
      %p195 = scmp.ne.s32.totalorder %s181, %s182
      %p196 = scmp.eq.s32.totalorder %s28, 1
      %p197 = por %p195, %p196
      %p199 = scmp.ne.s32.totalorder %s182, %s198
      %p200 = scmp.eq.s32.totalorder %s28, 0
      %p201 = por %p199, %p200
      %s202 = ssub.s32 %s22, %s29
      %p203 = scmp.eq.s32.totalorder %s202, 0
      %s205 = sadd.s32 %s204, 1
      %s206 = scalar_select %p203, %s204, %s205
      %p209 = pneg %p203
      %p210 = scmp.eq.s32.totalorder %s22, 1
      %p211 = por %p209, %p210
      %p212 = scmp.ne.s32.totalorder %s204, %s207
      %p213 = scmp.eq.s32.totalorder %s22, 0
      %p214 = por %p212, %p213
      %p215 = scmp.ne.s32.totalorder %s204, %s207
      %p216 = scmp.eq.s32.totalorder %s27, 1
      %p217 = por %p215, %p216
      %p218 = scmp.ne.s32.totalorder %s207, %s208
      %p219 = scmp.eq.s32.totalorder %s27, 0
      %p220 = por %p218, %p219
      %p221 = scmp.ne.s32.totalorder %s207, %s208
      %p222 = scmp.eq.s32.totalorder %s28, 1
      %p223 = por %p221, %p222
      %p225 = scmp.ne.s32.totalorder %s208, %s224
      %p226 = scmp.eq.s32.totalorder %s28, 0
      %p227 = por %p225, %p226
      %s229 = sadd.s32 %s228, 1
      %p232 = scmp.eq.s32.totalorder %s22, 1
      %p233 = scmp.ne.s32.totalorder %s228, %s230
      %p234 = scmp.eq.s32.totalorder %s22, 0
      %p235 = por %p233, %p234
      %p236 = scmp.ne.s32.totalorder %s228, %s230
      %p237 = scmp.eq.s32.totalorder %s27, 1
      %p238 = por %p236, %p237
      %p239 = scmp.ne.s32.totalorder %s230, %s231
      %p240 = scmp.eq.s32.totalorder %s27, 0
      %p241 = por %p239, %p240
      %p242 = scmp.ne.s32.totalorder %s230, %s231
      %p243 = scmp.eq.s32.totalorder %s28, 1
      %p244 = por %p242, %p243
      %p246 = scmp.ne.s32.totalorder %s231, %s245
      %p247 = scmp.eq.s32.totalorder %s28, 0
      %p248 = por %p246, %p247
      %s250 = sadd.s32 %s249, 1
      %p253 = scmp.eq.s32.totalorder %s22, 1
      %p254 = scmp.ne.s32.totalorder %s249, %s251
      %p255 = scmp.eq.s32.totalorder %s22, 0
      %p256 = por %p254, %p255
      %p257 = scmp.ne.s32.totalorder %s249, %s251
      %p258 = scmp.eq.s32.totalorder %s27, 1
      %p259 = por %p257, %p258
      %p260 = scmp.ne.s32.totalorder %s251, %s252
      %p261 = scmp.eq.s32.totalorder %s27, 0
      %p262 = por %p260, %p261
      %p263 = scmp.ne.s32.totalorder %s251, %s252
      %p264 = scmp.eq.s32.totalorder %s28, 1
      %p265 = por %p263, %p264
      %p267 = scmp.ne.s32.totalorder %s252, %s266
      %p268 = scmp.eq.s32.totalorder %s28, 0
      %p269 = por %p267, %p268
      %s271 = sadd.s32 %s270, 1
      %p274 = scmp.eq.s32.totalorder %s22, 1
      %p275 = scmp.ne.s32.totalorder %s270, %s272
      %p276 = scmp.eq.s32.totalorder %s22, 0
      %p277 = por %p275, %p276
      %p278 = scmp.ne.s32.totalorder %s270, %s272
      %p279 = scmp.eq.s32.totalorder %s27, 1
      %p280 = por %p278, %p279
      %p281 = scmp.ne.s32.totalorder %s272, %s273
      %p282 = scmp.eq.s32.totalorder %s27, 0
      %p283 = por %p281, %p282
      %p284 = scmp.ne.s32.totalorder %s272, %s273
      %p285 = scmp.eq.s32.totalorder %s28, 1
      %p286 = por %p284, %p285
      %p288 = scmp.ne.s32.totalorder %s273, %s287
      %p289 = scmp.eq.s32.totalorder %s28, 0
      %p290 = por %p288, %p289
      %s292 = sadd.s32 %s291, 1
      %p295 = scmp.eq.s32.totalorder %s22, 1
      %p296 = scmp.ne.s32.totalorder %s291, %s293
      %p297 = scmp.eq.s32.totalorder %s22, 0
      %p298 = por %p296, %p297
      %p299 = scmp.ne.s32.totalorder %s291, %s293
      %p300 = scmp.eq.s32.totalorder %s27, 1
      %p301 = por %p299, %p300
      %p302 = scmp.ne.s32.totalorder %s293, %s294
      %p303 = scmp.eq.s32.totalorder %s27, 0
      %p304 = por %p302, %p303
      %p305 = scmp.ne.s32.totalorder %s293, %s294
      %p306 = scmp.eq.s32.totalorder %s28, 1
      %p307 = por %p305, %p306
      %p309 = scmp.ne.s32.totalorder %s294, %s308
      %p310 = scmp.eq.s32.totalorder %s28, 0
      %p311 = por %p309, %p310
      %s313 = sadd.s32 %s312, 1
      %p316 = scmp.eq.s32.totalorder %s22, 1
      %p317 = scmp.ne.s32.totalorder %s312, %s314
      %p318 = scmp.eq.s32.totalorder %s22, 0
      %p319 = por %p317, %p318
      %p320 = scmp.ne.s32.totalorder %s312, %s314
      %p321 = scmp.eq.s32.totalorder %s27, 1
      %p322 = por %p320, %p321
      %p323 = scmp.ne.s32.totalorder %s314, %s315
      %p324 = scmp.eq.s32.totalorder %s27, 0
      %p325 = por %p323, %p324
      %p326 = scmp.ne.s32.totalorder %s314, %s315
      %p327 = scmp.eq.s32.totalorder %s28, 1
      %p328 = por %p326, %p327
      %p330 = scmp.ne.s32.totalorder %s315, %s329
      %p331 = scmp.eq.s32.totalorder %s28, 0
      %p332 = por %p330, %p331
      %s333 = ssub.s32 %s22, %s29
      %p334 = scmp.eq.s32.totalorder %s333, 0
      %s336 = sadd.s32 %s335, 1
      %s337 = scalar_select %p334, %s335, %s336
      %p340 = pneg %p334
      %p341 = scmp.eq.s32.totalorder %s22, 1
      %p342 = por %p340, %p341
      %p343 = scmp.ne.s32.totalorder %s335, %s338
      %p344 = scmp.eq.s32.totalorder %s22, 0
      %p345 = por %p343, %p344
      %p346 = scmp.ne.s32.totalorder %s335, %s338
      %p347 = scmp.eq.s32.totalorder %s27, 1
      %p348 = por %p346, %p347
      %p349 = scmp.ne.s32.totalorder %s338, %s339
      %p350 = scmp.eq.s32.totalorder %s27, 0
      %p351 = por %p349, %p350
      %p352 = scmp.ne.s32.totalorder %s338, %s339
      %p353 = scmp.eq.s32.totalorder %s28, 1
      %p354 = por %p352, %p353
      %p356 = scmp.ne.s32.totalorder %s339, %s355
      %p357 = scmp.eq.s32.totalorder %s28, 0
      %p358 = por %p356, %p357
      %p359 = scmp.le.s32.totalorder 1, %s22
      %p360 = scmp.lt.s32.totalorder %s22, 3
      %p361 = pnand %p359, %p360
      %p362 = pneg %p361
      // Predicated region
      $region9: #{tpu_custom_call.1} parent=5 // pred_check
        _
      $region10: #{tpu_custom_call.1} parent=5 // pred_check_branch
        %364 = sbr.rel (%p361) target = $region12
      $region11: #{tpu_custom_call.1} parent=5 // pred_region
        %s365 = ssub.s32 %s22, 1
        // Predicated region
        $region13: #{tpu_custom_call.1} parent=11 // pred_check
          %p366 = pneg %p95
        $region14: #{tpu_custom_call.1} parent=11 // pred_check_branch
          %368 = sbr.rel (%p366) target = $region16
        $region15: #{tpu_custom_call.1} parent=11 // pred_region
          _
        $region16: #{tpu_custom_call.1} parent=11 // pred_fallthru
          _
        // Predicated region
        $region17: #{tpu_custom_call.1} parent=11 // pred_check
          %p369 = pneg %p116
        $region18: #{tpu_custom_call.1} parent=11 // pred_check_branch
          %371 = sbr.rel (%p369) target = $region20
        $region19: #{tpu_custom_call.1} parent=11 // pred_region
          _
        $region20: #{tpu_custom_call.1} parent=11 // pred_fallthru
          _
        // Predicated region
        $region21: #{tpu_custom_call.1} parent=11 // pred_check
          %p372 = pneg %p241
        $region22: #{tpu_custom_call.1} parent=11 // pred_check_branch
          %374 = sbr.rel (%p372) target = $region24
        $region23: #{tpu_custom_call.1} parent=11 // pred_region
          _
        $region24: #{tpu_custom_call.1} parent=11 // pred_fallthru
          _
        // Predicated region
        $region25: #{tpu_custom_call.1} parent=11 // pred_check
          %p375 = pneg %p262
        $region26: #{tpu_custom_call.1} parent=11 // pred_check_branch
          %377 = sbr.rel (%p375) target = $region28
        $region27: #{tpu_custom_call.1} parent=11 // pred_region
          _
        $region28: #{tpu_custom_call.1} parent=11 // pred_fallthru
          _
        // Predicated region
        $region29: #{tpu_custom_call.1} parent=11 // pred_check
          %p378 = pneg %p283
        $region30: #{tpu_custom_call.1} parent=11 // pred_check_branch
          %380 = sbr.rel (%p378) target = $region32
        $region31: #{tpu_custom_call.1} parent=11 // pred_region
          _
        $region32: #{tpu_custom_call.1} parent=11 // pred_fallthru
          _
        // Predicated region
        $region33: #{tpu_custom_call.1} parent=11 // pred_check
          %p381 = pneg %p304
        $region34: #{tpu_custom_call.1} parent=11 // pred_check_branch
          %383 = sbr.rel (%p381) target = $region36
        $region35: #{tpu_custom_call.1} parent=11 // pred_region
          _
        $region36: #{tpu_custom_call.1} parent=11 // pred_fallthru
          _
        // Predicated region
        $region37: #{tpu_custom_call.1} parent=11 // pred_check
          %p384 = pneg %p325
        $region38: #{tpu_custom_call.1} parent=11 // pred_check_branch
          %386 = sbr.rel (%p384) target = $region40
        $region39: #{tpu_custom_call.1} parent=11 // pred_region
          _
        $region40: #{tpu_custom_call.1} parent=11 // pred_fallthru
          _
      $region12: #{tpu_custom_call.1} parent=5 // pred_fallthru
        _
      %p387 = scmp.lt.s32.totalorder %s22, 2
      // Predicated region
      $region41: #{tpu_custom_call.1} parent=5 // pred_check
        %p388 = pneg %p387
      $region42: #{tpu_custom_call.1} parent=5 // pred_check_branch
        %390 = sbr.rel (%p388) target = $region44
      $region43: #{tpu_custom_call.1} parent=5 // pred_region
        // Predicated region
        $region45: #{tpu_custom_call.1} parent=43 // pred_check
          %p391 = pneg %p42
        $region46: #{tpu_custom_call.1} parent=43 // pred_check_branch
          %393 = sbr.rel (%p391) target = $region48
        $region47: #{tpu_custom_call.1} parent=43 // pred_region
          %p394 = scmp.lt.s32.totalorder %s22, 1
          %s395 = scalar_select %p394, %s22, 1
          %s396 = smul.addr %s395, 8
          %s397 = scalar_lea.vmem %s0, %s396
        $region48: #{tpu_custom_call.1} parent=43 // pred_fallthru
          _
        // Predicated region
        $region49: #{tpu_custom_call.1} parent=43 // pred_check
          %p398 = pneg %p68
        $region50: #{tpu_custom_call.1} parent=43 // pred_check_branch
          %400 = sbr.rel (%p398) target = $region52
        $region51: #{tpu_custom_call.1} parent=43 // pred_region
          %p401 = scmp.lt.s32.totalorder %s22, 1
          %s402 = scalar_select %p401, %s22, 1
          %s403 = smul.addr %s402, 8
          %s404 = scalar_lea.vmem %s1, %s403
        $region52: #{tpu_custom_call.1} parent=43 // pred_fallthru
          _
        // Predicated region
        $region53: #{tpu_custom_call.1} parent=43 // pred_check
          %p405 = pneg %p136
        $region54: #{tpu_custom_call.1} parent=43 // pred_check_branch
          %407 = sbr.rel (%p405) target = $region56
        $region55: #{tpu_custom_call.1} parent=43 // pred_region
          %p408 = scmp.lt.s32.totalorder %s22, 1
          %s409 = scalar_select %p408, %s22, 1
          %s410 = smul.addr %s409, 8
          %s411 = scalar_lea.vmem %s4, %s410
        $region56: #{tpu_custom_call.1} parent=43 // pred_fallthru
          _
        // Predicated region
        $region57: #{tpu_custom_call.1} parent=43 // pred_check
          %p412 = pneg %p162
        $region58: #{tpu_custom_call.1} parent=43 // pred_check_branch
          %414 = sbr.rel (%p412) target = $region60
        $region59: #{tpu_custom_call.1} parent=43 // pred_region
          %p415 = scmp.lt.s32.totalorder %s22, 1
          %s416 = scalar_select %p415, %s22, 1
          %s417 = smul.addr %s416, 8
          %s418 = scalar_lea.vmem %s5, %s417
        $region60: #{tpu_custom_call.1} parent=43 // pred_fallthru
          _
        // Predicated region
        $region61: #{tpu_custom_call.1} parent=43 // pred_check
          %p419 = pneg %p188
        $region62: #{tpu_custom_call.1} parent=43 // pred_check_branch
          %421 = sbr.rel (%p419) target = $region64
        $region63: #{tpu_custom_call.1} parent=43 // pred_region
          %p422 = scmp.lt.s32.totalorder %s22, 1
          %s423 = scalar_select %p422, %s22, 1
          %s424 = smul.addr %s423, 8
          %s425 = scalar_lea.vmem %s6, %s424
        $region64: #{tpu_custom_call.1} parent=43 // pred_fallthru
          _
        // Predicated region
        $region65: #{tpu_custom_call.1} parent=43 // pred_check
          %p426 = pneg %p214
        $region66: #{tpu_custom_call.1} parent=43 // pred_check_branch
          %428 = sbr.rel (%p426) target = $region68
        $region67: #{tpu_custom_call.1} parent=43 // pred_region
          %p429 = scmp.lt.s32.totalorder %s22, 1
          %s430 = scalar_select %p429, %s22, 1
          %s431 = smul.addr %s430, 8
          %s432 = scalar_lea.vmem %s7, %s431
        $region68: #{tpu_custom_call.1} parent=43 // pred_fallthru
          _
      $region44: #{tpu_custom_call.1} parent=5 // pred_fallthru
        _
      %p433 = scmp.le.s32.totalorder 1, %s22
      %p434 = scmp.lt.s32.totalorder %s22, 3
      %p435 = pnand %p433, %p434
      %p436 = pneg %p435
      // Predicated region
      $region69: #{tpu_custom_call.1} parent=5 // pred_check
        _
      $region70: #{tpu_custom_call.1} parent=5 // pred_check_branch
        %438 = sbr.rel (%p435) target = $region72
      $region71: #{tpu_custom_call.1} parent=5 // pred_region
        %s439 = ssub.s32 %s22, 1
        %p440 = scmp.lt.s32.totalorder %s27, 1
        %s441 = scalar_select %p440, %s27, 1
        %s442 = smul.addr %s441, 8
        %s443 = scalar_lea.vmem %s0, %s442
        %p444 = pneg %p48
        %p445 = pneg %p45
        %p446 = scmp.lt.s32.totalorder %s27, 1
        %s447 = scalar_select %p446, %s27, 1
        %s448 = smul.addr %s447, 8
        %s449 = scalar_lea.vmem %s1, %s448
        %p450 = pneg %p74
        %p451 = pneg %p71
        %p452 = pneg %p95
        %p453 = pneg %p92
        %p454 = pneg %p116
        %p455 = pneg %p113
        %p456 = scmp.lt.s32.totalorder %s27, 1
        %s457 = scalar_select %p456, %s27, 1
        %s458 = smul.addr %s457, 8
        %s459 = scalar_lea.vmem %s4, %s458
        %p460 = pneg %p142
        %p461 = pneg %p139
        %p462 = scmp.lt.s32.totalorder %s27, 1
        %s463 = scalar_select %p462, %s27, 1
        %s464 = smul.addr %s463, 8
        %s465 = scalar_lea.vmem %s5, %s464
        %p466 = pneg %p168
        %p467 = pneg %p165
        %p468 = scmp.lt.s32.totalorder %s27, 1
        %s469 = scalar_select %p468, %s27, 1
        %s470 = smul.addr %s469, 8
        %s471 = scalar_lea.vmem %s6, %s470
        %p472 = pneg %p194
        %p473 = pneg %p191
        %p474 = scmp.lt.s32.totalorder %s27, 1
        %s475 = scalar_select %p474, %s27, 1
        %s476 = smul.addr %s475, 8
        %s477 = scalar_lea.vmem %s7, %s476
        %p478 = pneg %p220
        %p479 = pneg %p217
        %p480 = pneg %p241
        %p481 = pneg %p238
        %p482 = pneg %p262
        %p483 = pneg %p259
        %p484 = pneg %p283
        %p485 = pneg %p280
        %p486 = pneg %p304
        %p487 = pneg %p301
        %p488 = pneg %p325
        %p489 = pneg %p322
        %p490 = pneg %p351
        %p491 = pneg %p348
        %s492 = sand.u32 %s338, 1
        %s493 = scalar_lea.sflag [#allocation3], %s492
        %s494 = sand.u32 %s338, 1
        %s495 = smul.addr %s494, 8
        %s496 = scalar_lea.vmem [#allocation2], %s495
        %p497 = scmp.lt.s32.totalorder %s27, 1
        %s498 = scalar_select %p497, %s27, 1
        %s499 = smul.addr %s498, 8
        %s500 = scalar_lea.vmem %s0, %s499
        %p501 = scmp.lt.s32.totalorder %s27, 1
        %s502 = scalar_select %p501, %s27, 1
        %s503 = smul.addr %s502, 8
        %s504 = scalar_lea.vmem %s1, %s503
        %p505 = scmp.lt.s32.totalorder %s27, 1
        %s506 = scalar_select %p505, %s27, 1
        %s507 = smul.addr %s506, 8
        %s508 = scalar_lea.vmem %s4, %s507
        %p509 = scmp.lt.s32.totalorder %s27, 1
        %s510 = scalar_select %p509, %s27, 1
        %s511 = smul.addr %s510, 8
        %s512 = scalar_lea.vmem %s5, %s511
        %p513 = scmp.lt.s32.totalorder %s27, 1
        %s514 = scalar_select %p513, %s27, 1
        %s515 = smul.addr %s514, 8
        %s516 = scalar_lea.vmem %s6, %s515
        %p517 = scmp.lt.s32.totalorder %s27, 1
        %s518 = scalar_select %p517, %s27, 1
        %s519 = smul.addr %s518, 8
        %s520 = scalar_lea.vmem %s7, %s519
        %v521 = vld [vmem:[%s500] sm:$0xff]
        %v522 = vld [vmem:[%s2] sm:$0xff]
        %v523 = vld [vmem:[%s2 + $0x8] sm:$0xff]
        %vm524 = vcmask 130048
        %v526 = vsel %vm524, %v521, 0
        %528 = vmatprep.subr.mxu0 0.0
        %529 = vmatpush1.msra.mxu0 0.0
        %530 = vmatprep.subr.mxu0 0.0
        %531 = vmatpush1.msra.mxu0 0.0
        %532 = vmatprep.subr.mxu0 0.0
        %533 = vmatpush1.msra.mxu0 0.0
        %534 = vmatprep.subr.mxu0 0.0
        %535 = vmatpush1.msra.mxu0 0.0
        %536 = vmatprep.subr.mxu0 0.0
        %537 = vmatpush1.msra.mxu0 0.0
        %538 = vmatprep.subr.mxu0 0.0
        %539 = vmatpush1.msra.mxu0 0.0
        %540 = vmatprep.subr.mxu0 0.0
        %541 = vmatpush1.msra.mxu0 0.0
        %542 = vmatprep.subr.mxu0 0.0
        %543 = vmatpush1.msra.mxu0 0.0
        %544 = vmatprep.subr.mxu0 0.0
        %545 = vmatpush1.msra.mxu0 0.0
        %546 = vmatprep.subr.mxu0 0.0
        %547 = vmatpush1.msra.mxu0 0.0
        %548 = vmatprep.subr.mxu0 0.0
        %549 = vmatpush1.msra.mxu0 0.0
        %550 = vmatprep.subr.mxu0 0.0
        %551 = vmatpush1.msra.mxu0 0.0
        %552 = vmatprep.subr.mxu0 0.0
        %553 = vmatpush1.msra.mxu0 0.0
        %554 = vmatprep.subr.mxu0 0.0
        %555 = vmatpush1.msra.mxu0 0.0
        %556 = vmatprep.subr.mxu0 0.0
        %557 = vmatpush1.msra.mxu0 %v523
        %558 = vmatprep.subr.mxu0 0.0
        %559 = vmatpush1.msra.mxu0 %v522
        %560 = vmatprep.subr.mxu0 0.0
        %561 = vmatpush2.msra.mxu0 0.0
        %562 = vmatprep.subr.mxu0 0.0
        %563 = vmatpush2.msra.mxu0 0.0
        %564 = vmatprep.subr.mxu0 0.0
        %565 = vmatpush2.msra.mxu0 0.0
        %566 = vmatprep.subr.mxu0 0.0
        %567 = vmatpush2.msra.mxu0 0.0
        %568 = vmatprep.subr.mxu0 0.0
        %569 = vmatpush2.msra.mxu0 0.0
        %570 = vmatprep.subr.mxu0 0.0
        %571 = vmatpush2.msra.mxu0 0.0
        %572 = vmatprep.subr.mxu0 0.0
        %573 = vmatpush2.msra.mxu0 0.0
        %574 = vmatprep.subr.mxu0 0.0
        %575 = vmatpush2.msra.mxu0 0.0
        %576 = vmatprep.subr.mxu0 0.0
        %577 = vmatpush2.msra.mxu0 0.0
        %578 = vmatprep.subr.mxu0 0.0
        %579 = vmatpush2.msra.mxu0 0.0
        %580 = vmatprep.subr.mxu0 0.0
        %581 = vmatpush2.msra.mxu0 0.0
        %582 = vmatprep.subr.mxu0 0.0
        %583 = vmatpush2.msra.mxu0 0.0
        %584 = vmatprep.subr.mxu0 0.0
        %585 = vmatpush2.msra.mxu0 0.0
        %586 = vmatprep.subr.mxu0 0.0
        %587 = vmatpush2.msra.mxu0 0.0
        %588 = vmatprep.subr.mxu0 0.0
        %589 = vmatpush2.msra.mxu0 0.0
        %590 = vmatprep.subr.mxu0 0.0
        %591 = vmatpush2.msra.mxu0 0.0
        %592 = vmatprep.mubr.f32.mxu0 0.0
        %593 = vmatmul.mubr.f32.gmra.mxu0 %v526
        %v594 = vpop.f32.mrf.mxu0
        %v595 = vadd.f32 0.0, %v594
        %v596 = vpop.f32.mrf.mxu0
        %597 = vdwg.mxu0
        %v598 = vld [vmem:[%s504] sm:$0xff]
        %v599 = vld [vmem:[%s3] sm:$0xff]
        %v600 = vld [vmem:[%s3 + $0x8] sm:$0xff]
        %v602 = vsel %vm524, %v598, 0
        %604 = vmatprep.subr.mxu0 0.0
        %605 = vmatpush1.msra.mxu0 0.0
        %606 = vmatprep.subr.mxu0 0.0
        %607 = vmatpush1.msra.mxu0 0.0
        %608 = vmatprep.subr.mxu0 0.0
        %609 = vmatpush1.msra.mxu0 0.0
        %610 = vmatprep.subr.mxu0 0.0
        %611 = vmatpush1.msra.mxu0 0.0
        %612 = vmatprep.subr.mxu0 0.0
        %613 = vmatpush1.msra.mxu0 0.0
        %614 = vmatprep.subr.mxu0 0.0
        %615 = vmatpush1.msra.mxu0 0.0
        %616 = vmatprep.subr.mxu0 0.0
        %617 = vmatpush1.msra.mxu0 0.0
        %618 = vmatprep.subr.mxu0 0.0
        %619 = vmatpush1.msra.mxu0 0.0
        %620 = vmatprep.subr.mxu0 0.0
        %621 = vmatpush1.msra.mxu0 0.0
        %622 = vmatprep.subr.mxu0 0.0
        %623 = vmatpush1.msra.mxu0 0.0
        %624 = vmatprep.subr.mxu0 0.0
        %625 = vmatpush1.msra.mxu0 0.0
        %626 = vmatprep.subr.mxu0 0.0
        %627 = vmatpush1.msra.mxu0 0.0
        %628 = vmatprep.subr.mxu0 0.0
        %629 = vmatpush1.msra.mxu0 0.0
        %630 = vmatprep.subr.mxu0 0.0
        %631 = vmatpush1.msra.mxu0 0.0
        %632 = vmatprep.subr.mxu0 0.0
        %633 = vmatpush1.msra.mxu0 %v600
        %634 = vmatprep.subr.mxu0 0.0
        %635 = vmatpush1.msra.mxu0 %v599
        %636 = vmatprep.subr.mxu0 0.0
        %637 = vmatpush2.msra.mxu0 0.0
        %638 = vmatprep.subr.mxu0 0.0
        %639 = vmatpush2.msra.mxu0 0.0
        %640 = vmatprep.subr.mxu0 0.0
        %641 = vmatpush2.msra.mxu0 0.0
        %642 = vmatprep.subr.mxu0 0.0
        %643 = vmatpush2.msra.mxu0 0.0
        %644 = vmatprep.subr.mxu0 0.0
        %645 = vmatpush2.msra.mxu0 0.0
        %646 = vmatprep.subr.mxu0 0.0
        %647 = vmatpush2.msra.mxu0 0.0
        %648 = vmatprep.subr.mxu0 0.0
        %649 = vmatpush2.msra.mxu0 0.0
        %650 = vmatprep.subr.mxu0 0.0
        %651 = vmatpush2.msra.mxu0 0.0
        %652 = vmatprep.subr.mxu0 0.0
        %653 = vmatpush2.msra.mxu0 0.0
        %654 = vmatprep.subr.mxu0 0.0
        %655 = vmatpush2.msra.mxu0 0.0
        %656 = vmatprep.subr.mxu0 0.0
        %657 = vmatpush2.msra.mxu0 0.0
        %658 = vmatprep.subr.mxu0 0.0
        %659 = vmatpush2.msra.mxu0 0.0
        %660 = vmatprep.subr.mxu0 0.0
        %661 = vmatpush2.msra.mxu0 0.0
        %662 = vmatprep.subr.mxu0 0.0
        %663 = vmatpush2.msra.mxu0 0.0
        %664 = vmatprep.subr.mxu0 0.0
        %665 = vmatpush2.msra.mxu0 0.0
        %666 = vmatprep.subr.mxu0 0.0
        %667 = vmatpush2.msra.mxu0 0.0
        %668 = vmatprep.mubr.f32.mxu0 0.0
        %669 = vmatmul.mubr.f32.gmra.mxu0 %v602
        %v670 = vpop.f32.mrf.mxu0
        %v671 = vadd.f32 0.0, %v670
        %v672 = vpop.f32.mrf.mxu0
        %673 = vdwg.mxu0
        %v674 = vld [vmem:[%s508] sm:$0xff]
        %v675 = vld [vmem:[%s8] sm:$0xff]
        %vm676 = vcmask 64512
        %v678 = vsel %vm676, %v595, 0
        %680 = vmatprep.subr.mxu0 0.0
        %681 = vmatpush1.msra.mxu0 0.0
        %682 = vmatprep.subr.mxu0 0.0
        %683 = vmatpush1.msra.mxu0 0.0
        %684 = vmatprep.subr.mxu0 0.0
        %685 = vmatpush1.msra.mxu0 0.0
        %686 = vmatprep.subr.mxu0 0.0
        %687 = vmatpush1.msra.mxu0 0.0
        %688 = vmatprep.subr.mxu0 0.0
        %689 = vmatpush1.msra.mxu0 0.0
        %690 = vmatprep.subr.mxu0 0.0
        %691 = vmatpush1.msra.mxu0 0.0
        %692 = vmatprep.subr.mxu0 0.0
        %693 = vmatpush1.msra.mxu0 0.0
        %694 = vmatprep.subr.mxu0 0.0
        %695 = vmatpush1.msra.mxu0 0.0
        %696 = vmatprep.subr.mxu0 0.0
        %697 = vmatpush1.msra.mxu0 0.0
        %698 = vmatprep.subr.mxu0 0.0
        %699 = vmatpush1.msra.mxu0 0.0
        %700 = vmatprep.subr.mxu0 0.0
        %701 = vmatpush1.msra.mxu0 0.0
        %702 = vmatprep.subr.mxu0 0.0
        %703 = vmatpush1.msra.mxu0 0.0
        %704 = vmatprep.subr.mxu0 0.0
        %705 = vmatpush1.msra.mxu0 0.0
        %706 = vmatprep.subr.mxu0 0.0
        %707 = vmatpush1.msra.mxu0 0.0
        %708 = vmatprep.subr.mxu0 0.0
        %709 = vmatpush1.msra.mxu0 0.0
        %710 = vmatprep.subr.mxu0 0.0
        %711 = vmatpush1.msra.mxu0 %v675
        %712 = vmatprep.subr.mxu0 0.0
        %713 = vmatpush2.msra.mxu0 0.0
        %714 = vmatprep.subr.mxu0 0.0
        %715 = vmatpush2.msra.mxu0 0.0
        %716 = vmatprep.subr.mxu0 0.0
        %717 = vmatpush2.msra.mxu0 0.0
        %718 = vmatprep.subr.mxu0 0.0
        %719 = vmatpush2.msra.mxu0 0.0
        %720 = vmatprep.subr.mxu0 0.0
        %721 = vmatpush2.msra.mxu0 0.0
        %722 = vmatprep.subr.mxu0 0.0
        %723 = vmatpush2.msra.mxu0 0.0
        %724 = vmatprep.subr.mxu0 0.0
        %725 = vmatpush2.msra.mxu0 0.0
        %726 = vmatprep.subr.mxu0 0.0
        %727 = vmatpush2.msra.mxu0 0.0
        %728 = vmatprep.subr.mxu0 0.0
        %729 = vmatpush2.msra.mxu0 0.0
        %730 = vmatprep.subr.mxu0 0.0
        %731 = vmatpush2.msra.mxu0 0.0
        %732 = vmatprep.subr.mxu0 0.0
        %733 = vmatpush2.msra.mxu0 0.0
        %734 = vmatprep.subr.mxu0 0.0
        %735 = vmatpush2.msra.mxu0 0.0
        %736 = vmatprep.subr.mxu0 0.0
        %737 = vmatpush2.msra.mxu0 0.0
        %738 = vmatprep.subr.mxu0 0.0
        %739 = vmatpush2.msra.mxu0 0.0
        %740 = vmatprep.subr.mxu0 0.0
        %741 = vmatpush2.msra.mxu0 0.0
        %742 = vmatprep.subr.mxu0 0.0
        %743 = vmatpush2.msra.mxu0 0.0
        %744 = vmatprep.mubr.f32.mxu0 0.0
        %745 = vmatmul.mubr.f32.gmra.mxu0 %v678
        %v746 = vpop.f32.mrf.mxu0
        %v747 = vadd.f32 0.0, %v746
        %v748 = vpop.f32.mrf.mxu0
        %749 = vdwg.mxu0
        %751 = vset.pattern.permute.xlu0 0
        %752 = vperm.xlu0 %751, %v674
        %v753 = vpop.permute.xlu0 %752
        %v755 = vmul.f32 %v753, %v747
        %v756 = vld [vmem:[%s10] sm:$0x1]
        %v758 = vlaneseq
        %v759 = vshrl.u32 %v758, 7
        %v760 = vsub.s32 0, %v759
        %v761 = vrot.slane %v756, %v760
        %v763 = vadd.f32 %v755, %v761
        %v764 = vld [vmem:[%s512] sm:$0xff]
        %v765 = vld [vmem:[%s9] sm:$0xff]
        %v767 = vsel %vm676, %v671, 0
        %769 = vmatprep.subr.mxu0 0.0
        %770 = vmatpush1.msra.mxu0 0.0
        %771 = vmatprep.subr.mxu0 0.0
        %772 = vmatpush1.msra.mxu0 0.0
        %773 = vmatprep.subr.mxu0 0.0
        %774 = vmatpush1.msra.mxu0 0.0
        %775 = vmatprep.subr.mxu0 0.0
        %776 = vmatpush1.msra.mxu0 0.0
        %777 = vmatprep.subr.mxu0 0.0
        %778 = vmatpush1.msra.mxu0 0.0
        %779 = vmatprep.subr.mxu0 0.0
        %780 = vmatpush1.msra.mxu0 0.0
        %781 = vmatprep.subr.mxu0 0.0
        %782 = vmatpush1.msra.mxu0 0.0
        %783 = vmatprep.subr.mxu0 0.0
        %784 = vmatpush1.msra.mxu0 0.0
        %785 = vmatprep.subr.mxu0 0.0
        %786 = vmatpush1.msra.mxu0 0.0
        %787 = vmatprep.subr.mxu0 0.0
        %788 = vmatpush1.msra.mxu0 0.0
        %789 = vmatprep.subr.mxu0 0.0
        %790 = vmatpush1.msra.mxu0 0.0
        %791 = vmatprep.subr.mxu0 0.0
        %792 = vmatpush1.msra.mxu0 0.0
        %793 = vmatprep.subr.mxu0 0.0
        %794 = vmatpush1.msra.mxu0 0.0
        %795 = vmatprep.subr.mxu0 0.0
        %796 = vmatpush1.msra.mxu0 0.0
        %797 = vmatprep.subr.mxu0 0.0
        %798 = vmatpush1.msra.mxu0 0.0
        %799 = vmatprep.subr.mxu0 0.0
        %800 = vmatpush1.msra.mxu0 %v765
        %801 = vmatprep.subr.mxu0 0.0
        %802 = vmatpush2.msra.mxu0 0.0
        %803 = vmatprep.subr.mxu0 0.0
        %804 = vmatpush2.msra.mxu0 0.0
        %805 = vmatprep.subr.mxu0 0.0
        %806 = vmatpush2.msra.mxu0 0.0
        %807 = vmatprep.subr.mxu0 0.0
        %808 = vmatpush2.msra.mxu0 0.0
        %809 = vmatprep.subr.mxu0 0.0
        %810 = vmatpush2.msra.mxu0 0.0
        %811 = vmatprep.subr.mxu0 0.0
        %812 = vmatpush2.msra.mxu0 0.0
        %813 = vmatprep.subr.mxu0 0.0
        %814 = vmatpush2.msra.mxu0 0.0
        %815 = vmatprep.subr.mxu0 0.0
        %816 = vmatpush2.msra.mxu0 0.0
        %817 = vmatprep.subr.mxu0 0.0
        %818 = vmatpush2.msra.mxu0 0.0
        %819 = vmatprep.subr.mxu0 0.0
        %820 = vmatpush2.msra.mxu0 0.0
        %821 = vmatprep.subr.mxu0 0.0
        %822 = vmatpush2.msra.mxu0 0.0
        %823 = vmatprep.subr.mxu0 0.0
        %824 = vmatpush2.msra.mxu0 0.0
        %825 = vmatprep.subr.mxu0 0.0
        %826 = vmatpush2.msra.mxu0 0.0
        %827 = vmatprep.subr.mxu0 0.0
        %828 = vmatpush2.msra.mxu0 0.0
        %829 = vmatprep.subr.mxu0 0.0
        %830 = vmatpush2.msra.mxu0 0.0
        %831 = vmatprep.subr.mxu0 0.0
        %832 = vmatpush2.msra.mxu0 0.0
        %833 = vmatprep.mubr.f32.mxu0 0.0
        %834 = vmatmul.mubr.f32.gmra.mxu0 %v767
        %v835 = vpop.f32.mrf.mxu0
        %v836 = vadd.f32 0.0, %v835
        %v837 = vpop.f32.mrf.mxu0
        %838 = vdwg.mxu0
        %840 = vset.pattern.permute.xlu0 0
        %841 = vperm.xlu0 %840, %v764
        %v842 = vpop.permute.xlu0 %841
        %v844 = vmul.f32 %v842, %v836
        %v845 = vld [vmem:[%s11] sm:$0x1]
        %v847 = vlaneseq
        %v848 = vshrl.u32 %v847, 7
        %v849 = vsub.s32 0, %v848
        %v850 = vrot.slane %v845, %v849
        %v852 = vadd.f32 %v844, %v850
        %854 = vrot.lane.b32.xlu0 %v852, 16
        %v855 = vpop.permute.xlu0 %854
        %v857 = vsel %vm524, %v763, %v855
        %v858 = vld [vmem:[%s516] sm:$0xff]
        %860 = vset.pattern.permute.xlu0 0
        %861 = vperm.xlu0 %860, %v858
        %v862 = vpop.permute.xlu0 %861
        %v864 = vmul.f32 %v857, %v862
        %v865 = vld [vmem:[%s520] sm:$0xff]
        %867 = vset.pattern.permute.xlu0 0
        %868 = vperm.xlu0 %867, %v865
        %v869 = vpop.permute.xlu0 %868
        %v871 = vmul.f32 %v857, %v869
        %873 = vrot.lane.b32.xlu0 %v871, 32
        %v874 = vpop.permute.xlu0 %873
        %vm876 = vcmask 261120
        %v877 = vsel %vm876, %v864, %v874
        %v878 = vld [vmem:[%s12] sm:$0xff]
        %v879 = vld [vmem:[%s12 + $0x8] sm:$0xff]
        %v880 = vld [vmem:[%s12 + $0x10] sm:$0xff]
        %v881 = vld [vmem:[%s12 + $0x18] sm:$0xff]
        %v882 = vld [vmem:[%s12 + $0x20] sm:$0xff]
        %v883 = vld [vmem:[%s12 + $0x28] sm:$0xff]
        %v884 = vld [vmem:[%s12 + $0x30] sm:$0xff]
        %v885 = vld [vmem:[%s12 + $0x38] sm:$0xff]
        %vm886 = vcmask 523264
        %v888 = vsel %vm886, %v877, 0
        %890 = vmatprep.subr.mxu0 0.0
        %891 = vmatpush1.msra.mxu0 0.0
        %892 = vmatprep.subr.mxu0 0.0
        %893 = vmatpush1.msra.mxu0 0.0
        %894 = vmatprep.subr.mxu0 0.0
        %895 = vmatpush1.msra.mxu0 0.0
        %896 = vmatprep.subr.mxu0 0.0
        %897 = vmatpush1.msra.mxu0 0.0
        %898 = vmatprep.subr.mxu0 0.0
        %899 = vmatpush1.msra.mxu0 0.0
        %900 = vmatprep.subr.mxu0 0.0
        %901 = vmatpush1.msra.mxu0 0.0
        %902 = vmatprep.subr.mxu0 0.0
        %903 = vmatpush1.msra.mxu0 0.0
        %904 = vmatprep.subr.mxu0 0.0
        %905 = vmatpush1.msra.mxu0 0.0
        %906 = vmatprep.subr.mxu0 0.0
        %907 = vmatpush1.msra.mxu0 %v885
        %908 = vmatprep.subr.mxu0 0.0
        %909 = vmatpush1.msra.mxu0 %v884
        %910 = vmatprep.subr.mxu0 0.0
        %911 = vmatpush1.msra.mxu0 %v883
        %912 = vmatprep.subr.mxu0 0.0
        %913 = vmatpush1.msra.mxu0 %v882
        %914 = vmatprep.subr.mxu0 0.0
        %915 = vmatpush1.msra.mxu0 %v881
        %916 = vmatprep.subr.mxu0 0.0
        %917 = vmatpush1.msra.mxu0 %v880
        %918 = vmatprep.subr.mxu0 0.0
        %919 = vmatpush1.msra.mxu0 %v879
        %920 = vmatprep.subr.mxu0 0.0
        %921 = vmatpush1.msra.mxu0 %v878
        %922 = vmatprep.subr.mxu0 0.0
        %923 = vmatpush2.msra.mxu0 0.0
        %924 = vmatprep.subr.mxu0 0.0
        %925 = vmatpush2.msra.mxu0 0.0
        %926 = vmatprep.subr.mxu0 0.0
        %927 = vmatpush2.msra.mxu0 0.0
        %928 = vmatprep.subr.mxu0 0.0
        %929 = vmatpush2.msra.mxu0 0.0
        %930 = vmatprep.subr.mxu0 0.0
        %931 = vmatpush2.msra.mxu0 0.0
        %932 = vmatprep.subr.mxu0 0.0
        %933 = vmatpush2.msra.mxu0 0.0
        %934 = vmatprep.subr.mxu0 0.0
        %935 = vmatpush2.msra.mxu0 0.0
        %936 = vmatprep.subr.mxu0 0.0
        %937 = vmatpush2.msra.mxu0 0.0
        %938 = vmatprep.subr.mxu0 0.0
        %939 = vmatpush2.msra.mxu0 0.0
        %940 = vmatprep.subr.mxu0 0.0
        %941 = vmatpush2.msra.mxu0 0.0
        %942 = vmatprep.subr.mxu0 0.0
        %943 = vmatpush2.msra.mxu0 0.0
        %944 = vmatprep.subr.mxu0 0.0
        %945 = vmatpush2.msra.mxu0 0.0
        %946 = vmatprep.subr.mxu0 0.0
        %947 = vmatpush2.msra.mxu0 0.0
        %948 = vmatprep.subr.mxu0 0.0
        %949 = vmatpush2.msra.mxu0 0.0
        %950 = vmatprep.subr.mxu0 0.0
        %951 = vmatpush2.msra.mxu0 0.0
        %952 = vmatprep.subr.mxu0 0.0
        %953 = vmatpush2.msra.mxu0 0.0
        %954 = vmatprep.mubr.f32.mxu0 0.0
        %955 = vmatmul.mubr.f32.gmra.mxu0 %v888
        %v956 = vpop.f32.mrf.mxu0
        %v957 = vadd.f32 0.0, %v956
        %v958 = vpop.f32.mrf.mxu0
        %959 = vdwg.mxu0
        %960 = vst.msk [vmem:[%s496] sm:$0xff] %vm524, %v957
        %s961 = sand.u32 %s338, 1
        %s962 = scalar_lea.sflag [#allocation3], %s961
        %s963 = sand.u32 %s338, 1
        %s964 = smul.addr %s963, 8
        %s965 = scalar_lea.vmem [#allocation2], %s964
        // Predicated region
        $region73: #{tpu_custom_call.1} parent=71 // pred_check
          %p966 = pneg %p348
        $region74: #{tpu_custom_call.1} parent=71 // pred_check_branch
          %968 = sbr.rel (%p966) target = $region76
        $region75: #{tpu_custom_call.1} parent=71 // pred_region
          %s970 = ssub.s32 128, 128
          %971 = vsyncadd %s962, %s970
          %s972 = smul.addr %s27, 128
          %s973 = scalar_lea.hbm %s13, %s972
          %s975 = sshll.u32 %s965, 4
          %s976 = int_to_ptr.vmem [resolvable:$true] %s975
          %978 = dma.vmem_to_hbm [thread:$0]  %s976, 128, %s973, %s962
        $region76: #{tpu_custom_call.1} parent=71 // pred_fallthru
          _
      $region72: #{tpu_custom_call.1} parent=5 // pred_fallthru
        _
      %p979 = scmp.le.s32.totalorder 2, %s22
      // Predicated region
      $region77: #{tpu_custom_call.1} parent=5 // pred_check
        %p980 = pneg %p979
      $region78: #{tpu_custom_call.1} parent=5 // pred_check_branch
        %982 = sbr.rel (%p980) target = $region80
      $region79: #{tpu_custom_call.1} parent=5 // pred_region
        %s983 = ssub.s32 %s22, 2
        // Predicated region
        $region81: #{tpu_custom_call.1} parent=79 // pred_check
          %p984 = pneg %p354
        $region82: #{tpu_custom_call.1} parent=79 // pred_check_branch
          %986 = sbr.rel (%p984) target = $region84
        $region83: #{tpu_custom_call.1} parent=79 // pred_region
          %s987 = sand.u32 %s339, 1
          %s988 = scalar_lea.sflag [#allocation3], %s987
          %s989 = sand.u32 %s339, 1
          %s990 = smul.addr %s989, 8
          %s991 = scalar_lea.vmem [#allocation2], %s990
          %992 = dma.done %s988, 128
        $region84: #{tpu_custom_call.1} parent=79 // pred_fallthru
          _
      $region80: #{tpu_custom_call.1} parent=5 // pred_fallthru
        _
    $region6: #{tpu_custom_call.1} parent=1 // loop_footer
      %s26 = sadd.s32 1, %s22
    $region7: #{tpu_custom_call.1} parent=1 // loop_footer_branch
      %21 = sbr.rel target = $region3
    $region8: #{tpu_custom_call.1} parent=1 // loop_exit
      _
    %993 = vsyncpa [#allocation3], 1
    %s994 = scalar_lea.sflag [#allocation3], 1
    %995 = vsyncpa %s994, 1

</llo_original>
